<compile_context>
chip_gen: v7x
topology: tpu7x:2x2x1
jax: 0.10.0
libtpu: 0.0.40
codegen_flags: <defaults>
</compile_context>

<pallas_src>
import jax
import jax.numpy as jnp
from jax.experimental import pallas as pl
from jax.experimental.pallas import tpu as pltpu


def _vq_kernel(x_ref, e_ref, et_ref, e2_ref,
               q_ref, idx_ref, err_ref, counts_ref):
    x = x_ref[0]                     # (D, TT)  f32
    e = e_ref[...]                   # (Kp, D)  f32  (K possibly padded)
    et = et_ref[...]                 # (D, Kp)  f32
    e2 = e2_ref[...]                 # (Kp, 1)  f32  (+inf on padded rows)
    K = e.shape[0]

    # Argmin-equivalent distances: ||e_k||^2 - 2 e_k . x_n
    s = jnp.dot(e, x, preferred_element_type=jnp.float32)          # (Kp, TT) MXU
    d = e2 - 2.0 * s                                                # (Kp, TT)

    # argmin over the codebook (sublane) axis, first occurrence on ties.
    dmin = jnp.min(d, axis=0, keepdims=True)                        # (1, TT)
    iota = jax.lax.broadcasted_iota(jnp.int32, d.shape, 0)          # (Kp, TT)
    idx = jnp.min(jnp.where(d == dmin, iota, K),
                  axis=0, keepdims=True)                            # (1, TT) int32

    # One-hot encodings and codebook gather via MXU.
    enc = (iota == idx).astype(jnp.float32)                         # (Kp, TT)
    q = jnp.dot(et, enc, preferred_element_type=jnp.float32)        # (D, TT) MXU

    q_ref[...] = q[None]                                            # (1, D, TT)
    idx_ref[...] = idx[None]                                        # (1, 1, TT)

    # Per-sample squared error ||x_n - e_idx||^2 = ||x_n||^2 + dmin_n.
    x2 = jnp.sum(x * x, axis=0, keepdims=True)                      # (1, TT)
    err_ref[...] = jnp.maximum(x2 + dmin, 0.0)[None]                # (1, 1, TT)

    # Per-tile partial code counts (reduced in the wrapper).  Tiny store
    # (Kp values per tile), negligible next to the (D, TT) outputs.
    counts_ref[...] = jnp.sum(enc, axis=1, keepdims=True)[None, None]  # (1,1,Kp,1)


def _pick_tile_t(T, Kp):
    # Keep the ~4 live (Kp, TT) f32 intermediates under ~12 MiB so the kernel
    # (plus double-buffered IO) fits comfortably inside v7x's smaller VMEM.
    budget = max(128, ((12 << 20) // (4 * Kp * 4)) // 128 * 128)
    for cand in (2048, 1024, 512, 256, 128):
        if cand <= budget and T % cand == 0:
            return cand
    return T  # small / ragged T: single whole-T tile
    # TODO(synk): pad + mask the T axis for large T that is not a multiple of 128.


@jax.jit
def vector_quantizer_ema_forward(inputs, embedding, commitment_cost):
    """Eval-mode forward of VectorQuantizerEMA.

    inputs:    (B, embedding_dim, T) float32 (PyTorch NCL layout)
    embedding: (num_embeddings, embedding_dim) float32
    Returns (loss, quantized (B, D, T), perplexity, encoding_indices (B*T, 1)).
    """
    B, D, T = inputs.shape
    K = embedding.shape[0]
    N = B * T

    x = inputs.astype(jnp.float32)
    e = embedding.astype(jnp.float32)

    # Pad the codebook to a multiple of 128 so the (K, TT) working set and the
    # e^T lane dim stay dense; padded rows get +inf squared norm so they can
    # never win the argmin.
    Kp = ((K + 127) // 128) * 128
    if Kp != K:
        e = jnp.concatenate([e, jnp.zeros((Kp - K, D), jnp.float32)], axis=0)
    e2 = jnp.sum(e * e, axis=1, keepdims=True)                      # (Kp, 1)
    if Kp != K:
        e2 = e2.at[K:].set(jnp.inf)
    et = e.T                                                        # (D, Kp) tiny

    tile_t = _pick_tile_t(T, Kp)
    n_t = T // tile_t

    q, idx, err, counts = pl.pallas_call(
        _vq_kernel,
        grid=(B, n_t),
        in_specs=[
            pl.BlockSpec((1, D, tile_t), lambda b, t: (b, 0, t)),    # x tile
            pl.BlockSpec((Kp, D), lambda b, t: (0, 0)),              # codebook
            pl.BlockSpec((D, Kp), lambda b, t: (0, 0)),              # codebook^T
            pl.BlockSpec((Kp, 1), lambda b, t: (0, 0)),              # ||e||^2
        ],
        out_specs=(
            pl.BlockSpec((1, D, tile_t), lambda b, t: (b, 0, t)),    # quantized
            pl.BlockSpec((1, 1, tile_t), lambda b, t: (b, 0, t)),    # indices
            pl.BlockSpec((1, 1, tile_t), lambda b, t: (b, 0, t)),    # per-sample err
            pl.BlockSpec((1, 1, Kp, 1), lambda b, t: (b, t, 0, 0)),  # partial counts
        ),
        out_shape=(
            jax.ShapeDtypeStruct((B, D, T), jnp.float32),
            jax.ShapeDtypeStruct((B, 1, T), jnp.int32),
            jax.ShapeDtypeStruct((B, 1, T), jnp.float32),
            jax.ShapeDtypeStruct((B, n_t, Kp, 1), jnp.float32),
        ),
        compiler_params=pltpu.CompilerParams(
            dimension_semantics=("parallel", "parallel")),
    )(x, e, et, e2)

    # F.mse_loss(quantized.detach(), inputs): mean over all B*T*D elements.
    e_latent_loss = jnp.sum(err) / (N * D)
    loss = commitment_cost * e_latent_loss

    # Straight-through estimator: values equal q, gradient w.r.t. inputs = id.
    quantized = x + jax.lax.stop_gradient(q - x)                    # (B, D, T)

    counts_total = jnp.sum(counts, axis=(0, 1))[:K, 0]              # (K,)
    avg_probs = counts_total / N
    perplexity = jnp.exp(-jnp.sum(avg_probs * jnp.log(avg_probs + 1e-10)))

    encoding_indices = idx.reshape(N, 1)                            # (B*T, 1)
    return loss, quantized.astype(inputs.dtype), perplexity, encoding_indices


if __name__ == "__main__":
    # Module config (deterministic, synthetic parameters)
    num_embeddings = 128
    embedding_dim = 16
    commitment_cost = 0.25

    key = jax.random.PRNGKey(0)
    k_inp, k_emb = jax.random.split(key)

    # Input: (B, embedding_dim, T) -- the PyTorch forward permutes (0, 2, 1).
    B, T = 2, 256
    inputs = jax.random.normal(k_inp, (B, embedding_dim, T), dtype=jnp.float32)
    embedding = jax.random.normal(k_emb, (num_embeddings, embedding_dim),
                                  dtype=jnp.float32)

    loss, quantized, perplexity, encoding_indices = jax.block_until_ready(
        vector_quantizer_ema_forward(inputs, embedding, commitment_cost)
    )

    assert quantized.shape == (B, embedding_dim, T)
    assert encoding_indices.shape == (B * T, 1)
    assert loss.shape == () and perplexity.shape == ()

    # Lightweight, tie-robust check against a pure-JAX reference.
    x_flat = jnp.transpose(inputs, (0, 2, 1)).reshape(-1, embedding_dim)
    d_ref = (jnp.sum(x_flat ** 2, axis=1, keepdims=True)
             + jnp.sum(embedding ** 2, axis=1)
             - 2.0 * x_flat @ embedding.T)
    d_chosen = jnp.take_along_axis(d_ref, encoding_indices, axis=1)[:, 0]
    assert bool(jnp.all(d_chosen <= jnp.min(d_ref, axis=1) + 1e-3)), \
        "kernel did not select a nearest code"
    q_ref = embedding[encoding_indices[:, 0]]
    q_flat = jnp.transpose(quantized, (0, 2, 1)).reshape(-1, embedding_dim)
    assert bool(jnp.allclose(q_flat, q_ref, atol=1e-4, rtol=1e-4))
    loss_ref = commitment_cost * jnp.mean((q_ref - x_flat) ** 2)
    assert bool(jnp.allclose(loss, loss_ref, rtol=1e-4, atol=1e-5))
    cnt = jnp.sum(jax.nn.one_hot(encoding_indices[:, 0], num_embeddings), axis=0)
    avg = cnt / (B * T)
    perp_ref = jnp.exp(-jnp.sum(avg * jnp.log(avg + 1e-10)))
    assert bool(jnp.allclose(perplexity, perp_ref, rtol=1e-4, atol=1e-4))

    print("KERNEL_OK")
</pallas_src>

<mosaic_0001>
module attributes {stable_mosaic.version = 11 : i64} {
  func.func @_vq_kernel(%arg0: i32, %arg1: i32, %arg2: memref<1x16x256xf32, #tpu.memory_space<vmem>>, %arg3: memref<128x16xf32, #tpu.memory_space<vmem>>, %arg4: memref<16x128xf32, #tpu.memory_space<vmem>>, %arg5: memref<128x1xf32, #tpu.memory_space<vmem>>, %arg6: memref<1x16x256xf32, #tpu.memory_space<vmem>>, %arg7: memref<1x1x256xi32, #tpu.memory_space<vmem>>, %arg8: memref<1x1x256xf32, #tpu.memory_space<vmem>>, %arg9: memref<1x1x128x1xf32, #tpu.memory_space<vmem>>) attributes {dimension_semantics = [#tpu.dimension_semantics<parallel>, #tpu.dimension_semantics<parallel>], iteration_bounds = array<i64: 2, 1>, scalar_prefetch = 0 : i64, scratch_operands = 0 : i64, tpu.core_type = #tpu.core_type<tc>, window_params = [{transform_indices = @transform_0, window_bounds = array<i64: 1, 16, 256>}, {pipeline_mode = #tpu.pipeline_mode<synchronous>, transform_indices = @transform_1, window_bounds = array<i64: 128, 16>}, {pipeline_mode = #tpu.pipeline_mode<synchronous>, transform_indices = @transform_2, window_bounds = array<i64: 16, 128>}, {pipeline_mode = #tpu.pipeline_mode<synchronous>, transform_indices = @transform_3, window_bounds = array<i64: 128, 1>}, {transform_indices = @transform_4, window_bounds = array<i64: 1, 16, 256>}, {transform_indices = @transform_5, window_bounds = array<i64: 1, 1, 256>}, {transform_indices = @transform_6, window_bounds = array<i64: 1, 1, 256>}, {transform_indices = @transform_7, window_bounds = array<i64: 1, 1, 128, 1>}]} {
    %c0 = arith.constant 0 : index
    %c0_0 = arith.constant 0 : index
    %c0_1 = arith.constant 0 : index
    %0 = vector.load %arg2[%c0, %c0_0, %c0_1] : memref<1x16x256xf32, #tpu.memory_space<vmem>>, vector<1x16x256xf32>
    %1 = vector.shape_cast %0 : vector<1x16x256xf32> to vector<16x256xf32>
    %c0_2 = arith.constant 0 : index
    %c0_3 = arith.constant 0 : index
    %2 = vector.load %arg3[%c0_2, %c0_3] : memref<128x16xf32, #tpu.memory_space<vmem>>, vector<128x16xf32>
    %c0_4 = arith.constant 0 : index
    %c0_5 = arith.constant 0 : index
    %3 = vector.load %arg4[%c0_4, %c0_5] : memref<16x128xf32, #tpu.memory_space<vmem>>, vector<16x128xf32>
    %c0_6 = arith.constant 0 : index
    %c0_7 = arith.constant 0 : index
    %4 = vector.load %arg5[%c0_6, %c0_7] : memref<128x1xf32, #tpu.memory_space<vmem>>, vector<128x1xf32>
    %cst = arith.constant dense<0.000000e+00> : vector<128x256xf32>
    %5 = tpu.matmul %2, %1, %cst {dimension_numbers = #tpu.dot_dimension_numbers<[1], [0], [0], [1], [0, 0, 1, 1], [], []>} : vector<128x16xf32>, vector<16x256xf32>, vector<128x256xf32> -> vector<128x256xf32>
    %cst_8 = arith.constant 2.000000e+00 : f32
    %6 = vector.broadcast %cst_8 : f32 to vector<128x256xf32>
    %7 = arith.mulf %6, %5 : vector<128x256xf32>
    %8 = vector.broadcast %4 : vector<128x1xf32> to vector<128x256xf32>
    %9 = arith.subf %8, %7 : vector<128x256xf32>
    %cst_9 = arith.constant dense<0x7F800000> : vector<256xf32>
    %10 = vector.multi_reduction <minimumf>, %9, %cst_9 [0] : vector<128x256xf32> to vector<256xf32>
    %11 = vector.shape_cast %10 : vector<256xf32> to vector<1x256xf32>
    %12 = tpu.iota {dimensions = array<i32: 0>} : vector<128x256xi32>
    %13 = vector.broadcast %11 : vector<1x256xf32> to vector<128x256xf32>
    %14 = arith.cmpf oeq, %9, %13 : vector<128x256xf32>
    %c128_i32 = arith.constant 128 : i32
    %15 = vector.broadcast %c128_i32 : i32 to vector<128x256xi32>
    %16 = arith.select %14, %12, %15 : vector<128x256xi1>, vector<128x256xi32>
    %cst_10 = arith.constant dense<2147483647> : vector<256xi32>
    %17 = vector.multi_reduction <minsi>, %16, %cst_10 [0] : vector<128x256xi32> to vector<256xi32>
    %18 = vector.shape_cast %17 : vector<256xi32> to vector<1x256xi32>
    %19 = vector.broadcast %18 : vector<1x256xi32> to vector<128x256xi32>
    %20 = arith.cmpi eq, %12, %19 : vector<128x256xi32>
    %21 = arith.extui %20 : vector<128x256xi1> to vector<128x256xi32>
    %22 = arith.sitofp %21 : vector<128x256xi32> to vector<128x256xf32>
    %cst_11 = arith.constant dense<0.000000e+00> : vector<16x256xf32>
    %23 = tpu.matmul %3, %22, %cst_11 {dimension_numbers = #tpu.dot_dimension_numbers<[1], [0], [0], [1], [0, 0, 1, 1], [], []>} : vector<16x128xf32>, vector<128x256xf32>, vector<16x256xf32> -> vector<16x256xf32>
    %24 = vector.shape_cast %23 : vector<16x256xf32> to vector<1x16x256xf32>
    %c0_12 = arith.constant 0 : index
    %c0_13 = arith.constant 0 : index
    %c0_14 = arith.constant 0 : index
    %25 = vector.load %arg6[%c0_12, %c0_13, %c0_14] : memref<1x16x256xf32, #tpu.memory_space<vmem>>, vector<1x16x256xf32>
    tpu.vector_store %arg6[%c0_12, %c0_13, %c0_14], %24 {strides = array<i32>} : memref<1x16x256xf32, #tpu.memory_space<vmem>>, vector<1x16x256xf32>,
    %26 = vector.shape_cast %18 : vector<1x256xi32> to vector<1x1x256xi32>
    %c0_15 = arith.constant 0 : index
    %c0_16 = arith.constant 0 : index
    %c0_17 = arith.constant 0 : index
    %27 = vector.load %arg7[%c0_15, %c0_16, %c0_17] : memref<1x1x256xi32, #tpu.memory_space<vmem>>, vector<1x1x256xi32>
    tpu.vector_store %arg7[%c0_15, %c0_16, %c0_17], %26 {strides = array<i32>} : memref<1x1x256xi32, #tpu.memory_space<vmem>>, vector<1x1x256xi32>,
    %28 = arith.mulf %1, %1 : vector<16x256xf32>
    %cst_18 = arith.constant dense<0.000000e+00> : vector<256xf32>
    %29 = vector.multi_reduction <add>, %28, %cst_18 [0] : vector<16x256xf32> to vector<256xf32>
    %30 = vector.shape_cast %29 : vector<256xf32> to vector<1x256xf32>
    %31 = arith.addf %30, %11 : vector<1x256xf32>
    %cst_19 = arith.constant 0.000000e+00 : f32
    %32 = vector.broadcast %cst_19 : f32 to vector<1x256xf32>
    %33 = arith.maximumf %31, %32 : vector<1x256xf32>
    %34 = vector.shape_cast %33 : vector<1x256xf32> to vector<1x1x256xf32>
    %c0_20 = arith.constant 0 : index
    %c0_21 = arith.constant 0 : index
    %c0_22 = arith.constant 0 : index
    %35 = vector.load %arg8[%c0_20, %c0_21, %c0_22] : memref<1x1x256xf32, #tpu.memory_space<vmem>>, vector<1x1x256xf32>
    tpu.vector_store %arg8[%c0_20, %c0_21, %c0_22], %34 {strides = array<i32>} : memref<1x1x256xf32, #tpu.memory_space<vmem>>, vector<1x1x256xf32>,
    %cst_23 = arith.constant dense<0.000000e+00> : vector<128xf32>
    %36 = vector.multi_reduction <add>, %22, %cst_23 [1] : vector<128x256xf32> to vector<128xf32>
    %37 = vector.shape_cast %36 : vector<128xf32> to vector<128x1xf32>
    %38 = vector.shape_cast %37 : vector<128x1xf32> to vector<1x1x128x1xf32>
    %c0_24 = arith.constant 0 : index
    %c0_25 = arith.constant 0 : index
    %c0_26 = arith.constant 0 : index
    %c0_27 = arith.constant 0 : index
    %39 = vector.load %arg9[%c0_24, %c0_25, %c0_26, %c0_27] : memref<1x1x128x1xf32, #tpu.memory_space<vmem>>, vector<1x1x128x1xf32>
    tpu.vector_store %arg9[%c0_24, %c0_25, %c0_26, %c0_27], %38 {strides = array<i32>} : memref<1x1x128x1xf32, #tpu.memory_space<vmem>>, vector<1x1x128x1xf32>,
    return
  }
  func.func @transform_0(%arg0: i32, %arg1: i32) -> (i32, i32, i32) {
    %c0_i32 = arith.constant 0 : i32
    %c0_i32_0 = arith.constant 0 : i32
    return %arg0, %c0_i32, %arg1 : i32, i32, i32
  }
  func.func @transform_1(%arg0: i32, %arg1: i32) -> (i32, i32) {
    %c0_i32 = arith.constant 0 : i32
    %c0_i32_0 = arith.constant 0 : i32
    %c0_i32_1 = arith.constant 0 : i32
    return %c0_i32, %c0_i32_0 : i32, i32
  }
  func.func @transform_2(%arg0: i32, %arg1: i32) -> (i32, i32) {
    %c0_i32 = arith.constant 0 : i32
    %c0_i32_0 = arith.constant 0 : i32
    %c0_i32_1 = arith.constant 0 : i32
    return %c0_i32, %c0_i32_0 : i32, i32
  }
  func.func @transform_3(%arg0: i32, %arg1: i32) -> (i32, i32) {
    %c0_i32 = arith.constant 0 : i32
    %c0_i32_0 = arith.constant 0 : i32
    %c0_i32_1 = arith.constant 0 : i32
    return %c0_i32, %c0_i32_0 : i32, i32
  }
  func.func @transform_4(%arg0: i32, %arg1: i32) -> (i32, i32, i32) {
    %c0_i32 = arith.constant 0 : i32
    %c0_i32_0 = arith.constant 0 : i32
    return %arg0, %c0_i32, %arg1 : i32, i32, i32
  }
  func.func @transform_5(%arg0: i32, %arg1: i32) -> (i32, i32, i32) {
    %c0_i32 = arith.constant 0 : i32
    %c0_i32_0 = arith.constant 0 : i32
    return %arg0, %c0_i32, %arg1 : i32, i32, i32
  }
  func.func @transform_6(%arg0: i32, %arg1: i32) -> (i32, i32, i32) {
    %c0_i32 = arith.constant 0 : i32
    %c0_i32_0 = arith.constant 0 : i32
    return %arg0, %c0_i32, %arg1 : i32, i32, i32
  }
  func.func @transform_7(%arg0: i32, %arg1: i32) -> (i32, i32, i32, i32) {
    %c0_i32 = arith.constant 0 : i32
    %c0_i32_0 = arith.constant 0 : i32
    %c0_i32_1 = arith.constant 0 : i32
    return %arg0, %arg1, %c0_i32, %c0_i32_0 : i32, i32, i32, i32
  }
}

</mosaic_0001>

<llo_original>
// kernel: vector_quantizer_ema_forward.1
$region0: #{vector_quantizer_ema_forward.1}
  #allocation0 [shape = 'u32[]', space=smem, size = 0x4, offset = 0x4, fixed_abs, tag = 'smem constant byte address 0x4 - core index']
  #allocation1 [shape = 'u32[144,128]{1,0:T(1,128)}', space=vmem, size = 0x12000, scoped, tag = 'internal scratch']
  %s0 = inlined_call_operand.vmem [shape: f32[2,16,256], index: 0, kind: input, shape index: {}]
  %s1 = inlined_call_operand.vmem [shape: f32[128,16], index: 1, kind: input, shape index: {}]
  %s2 = inlined_call_operand.vmem [shape: f32[16,128], index: 2, kind: input, shape index: {}]
  %s3 = inlined_call_operand.vmem [shape: f32[128,1], index: 3, kind: input, shape index: {}]
  %s4 = inlined_call_operand.vmem [shape: f32[2,16,256], index: 4, kind: output, shape index: {0}]
  %s5 = inlined_call_operand.hbm [shape: s32[2,1,256], index: 5, kind: output, shape index: {1}]
  %s6 = inlined_call_operand.vmem [shape: f32[2,1,256], index: 6, kind: output, shape index: {2}]
  %s7 = inlined_call_operand.vmem [shape: f32[2,1,128,1], index: 7, kind: output, shape index: {3}]
  %8 = xla_tuple %s4, %s5, %s6, %s7
  %s9 = sld [smem:[#allocation0]]
  $region73: #{vector_quantizer_ema_forward.1} parent=0
    _
  %s11 = ssub.s32 1, %s9
  %s12 = scalar_select 0, %s11, %s9
  $region1: #{vector_quantizer_ema_forward.1} parent=0
    #allocation2 [shape = 'u8[2048]{0}', space=vmem, size = 0x800, scoped, tag = 'output window, operand 1']
    #allocation3 [shape = 's32[2]{0}', space=sflag, size = 0x8, scoped, tag = 'scoped memory for vector_quantizer_ema_forward.1']
    %13 = vsyncpa [#allocation3], 0
    %s14 = scalar_lea.sflag [#allocation3], 1
    %15 = vsyncpa %s14, 0
    loop: start=0, step=1, limit=4
    $region2: #{vector_quantizer_ema_forward.1} parent=1 // loop_pre_header
      _
    $region3: #{vector_quantizer_ema_forward.1} parent=1 // loop_header
      %s17 = sphi 0, %s21
      %p18 = scmp.ge.s32.totalorder %s17, 4
      %s24 = sphi 0, %s36
      %s25 = sphi 0, %s32
      %s26 = sphi 0, %s24
      %s27 = sphi 0, %s25
      %s28 = sphi 0, %s26
      %s29 = sphi 0, %s27
      %s41 = sphi 0, %s43
      %s44 = sphi 0, %s41
      %s45 = sphi 0, %s44
      %s61 = sphi 0, %s45
      %s65 = sphi 0, %s65
      %s67 = sphi 0, %s65
      %s68 = sphi 0, %s67
      %s82 = sphi 0, %s68
      %s86 = sphi 0, %s86
      %s88 = sphi 0, %s86
      %s89 = sphi 0, %s88
      %s103 = sphi 0, %s89
      %s107 = sphi 0, %s107
      %s109 = sphi 0, %s107
      %s110 = sphi 0, %s109
      %s124 = sphi 0, %s110
      %s132 = sphi 0, %s134
      %s135 = sphi 0, %s132
      %s136 = sphi 0, %s135
      %s152 = sphi 0, %s136
      %s160 = sphi 0, %s162
      %s163 = sphi 0, %s160
      %s164 = sphi 0, %s163
      %s180 = sphi 0, %s164
      %s188 = sphi 0, %s190
      %s191 = sphi 0, %s188
      %s192 = sphi 0, %s191
      %s208 = sphi 0, %s192
      %s216 = sphi 0, %s218
      %s219 = sphi 0, %s216
      %s220 = sphi 0, %s219
      %s236 = sphi 0, %s220
    $region4: #{vector_quantizer_ema_forward.1} parent=1 // loop_header_branch
      %20 = sbr.rel (%p18) target = $region8
    $region5: #{vector_quantizer_ema_forward.1} parent=1 // loop_body
      %s22 = ssub.s32 %s17, 1
      %s23 = ssub.s32 %s17, 2
      %s30 = sadd.s32 1, %s25
      %p31 = scmp.ge.s32.totalorder %s30, 1
      %s32 = scalar_select %p31, 0, %s30
      %s33 = sadd.s32 1, %s24
      %s34 = scalar_select %p31, %s33, %s24
      %p35 = scmp.ge.s32.totalorder %s34, 2
      %s36 = scalar_select %p35, 0, %s34
      %s37 = ssub.s32 %s24, %s36
      %s38 = ssub.s32 %s25, %s32
      %s39 = sor.u32 %s37, %s38
      %p40 = scmp.eq.s32.totalorder %s39, 0
      %s42 = sadd.s32 %s41, 1
      %s43 = scalar_select %p40, %s41, %s42
      %p46 = pneg %p40
      %p47 = scmp.eq.s32.totalorder %s17, 1
      %p48 = por %p46, %p47
      %p49 = scmp.ne.s32.totalorder %s41, %s44
      %p50 = scmp.eq.s32.totalorder %s17, 0
      %p51 = por %p49, %p50
      %p52 = scmp.ne.s32.totalorder %s41, %s44
      %p53 = scmp.eq.s32.totalorder %s22, 1
      %p54 = por %p52, %p53
      %p55 = scmp.ne.s32.totalorder %s44, %s45
      %p56 = scmp.eq.s32.totalorder %s22, 0
      %p57 = por %p55, %p56
      %p58 = scmp.ne.s32.totalorder %s44, %s45
      %p59 = scmp.eq.s32.totalorder %s23, 1
      %p60 = por %p58, %p59
      %p62 = scmp.ne.s32.totalorder %s45, %s61
      %p63 = scmp.eq.s32.totalorder %s23, 0
      %p64 = por %p62, %p63
      %s66 = sadd.s32 %s65, 1
      %p69 = scmp.eq.s32.totalorder %s17, 1
      %p70 = scmp.ne.s32.totalorder %s65, %s67
      %p71 = scmp.eq.s32.totalorder %s17, 0
      %p72 = por %p70, %p71
      %p73 = scmp.ne.s32.totalorder %s65, %s67
      %p74 = scmp.eq.s32.totalorder %s22, 1
      %p75 = por %p73, %p74
      %p76 = scmp.ne.s32.totalorder %s67, %s68
      %p77 = scmp.eq.s32.totalorder %s22, 0
      %p78 = por %p76, %p77
      %p79 = scmp.ne.s32.totalorder %s67, %s68
      %p80 = scmp.eq.s32.totalorder %s23, 1
      %p81 = por %p79, %p80
      %p83 = scmp.ne.s32.totalorder %s68, %s82
      %p84 = scmp.eq.s32.totalorder %s23, 0
      %p85 = por %p83, %p84
      %s87 = sadd.s32 %s86, 1
      %p90 = scmp.eq.s32.totalorder %s17, 1
      %p91 = scmp.ne.s32.totalorder %s86, %s88
      %p92 = scmp.eq.s32.totalorder %s17, 0
      %p93 = por %p91, %p92
      %p94 = scmp.ne.s32.totalorder %s86, %s88
      %p95 = scmp.eq.s32.totalorder %s22, 1
      %p96 = por %p94, %p95
      %p97 = scmp.ne.s32.totalorder %s88, %s89
      %p98 = scmp.eq.s32.totalorder %s22, 0
      %p99 = por %p97, %p98
      %p100 = scmp.ne.s32.totalorder %s88, %s89
      %p101 = scmp.eq.s32.totalorder %s23, 1
      %p102 = por %p100, %p101
      %p104 = scmp.ne.s32.totalorder %s89, %s103
      %p105 = scmp.eq.s32.totalorder %s23, 0
      %p106 = por %p104, %p105
      %s108 = sadd.s32 %s107, 1
      %p111 = scmp.eq.s32.totalorder %s17, 1
      %p112 = scmp.ne.s32.totalorder %s107, %s109
      %p113 = scmp.eq.s32.totalorder %s17, 0
      %p114 = por %p112, %p113
      %p115 = scmp.ne.s32.totalorder %s107, %s109
      %p116 = scmp.eq.s32.totalorder %s22, 1
      %p117 = por %p115, %p116
      %p118 = scmp.ne.s32.totalorder %s109, %s110
      %p119 = scmp.eq.s32.totalorder %s22, 0
      %p120 = por %p118, %p119
      %p121 = scmp.ne.s32.totalorder %s109, %s110
      %p122 = scmp.eq.s32.totalorder %s23, 1
      %p123 = por %p121, %p122
      %p125 = scmp.ne.s32.totalorder %s110, %s124
      %p126 = scmp.eq.s32.totalorder %s23, 0
      %p127 = por %p125, %p126
      %s128 = ssub.s32 %s24, %s36
      %s129 = ssub.s32 %s25, %s32
      %s130 = sor.u32 %s128, %s129
      %p131 = scmp.eq.s32.totalorder %s130, 0
      %s133 = sadd.s32 %s132, 1
      %s134 = scalar_select %p131, %s132, %s133
      %p137 = pneg %p131
      %p138 = scmp.eq.s32.totalorder %s17, 1
      %p139 = por %p137, %p138
      %p140 = scmp.ne.s32.totalorder %s132, %s135
      %p141 = scmp.eq.s32.totalorder %s17, 0
      %p142 = por %p140, %p141
      %p143 = scmp.ne.s32.totalorder %s132, %s135
      %p144 = scmp.eq.s32.totalorder %s22, 1
      %p145 = por %p143, %p144
      %p146 = scmp.ne.s32.totalorder %s135, %s136
      %p147 = scmp.eq.s32.totalorder %s22, 0
      %p148 = por %p146, %p147
      %p149 = scmp.ne.s32.totalorder %s135, %s136
      %p150 = scmp.eq.s32.totalorder %s23, 1
      %p151 = por %p149, %p150
      %p153 = scmp.ne.s32.totalorder %s136, %s152
      %p154 = scmp.eq.s32.totalorder %s23, 0
      %p155 = por %p153, %p154
      %s156 = ssub.s32 %s24, %s36
      %s157 = ssub.s32 %s25, %s32
      %s158 = sor.u32 %s156, %s157
      %p159 = scmp.eq.s32.totalorder %s158, 0
      %s161 = sadd.s32 %s160, 1
      %s162 = scalar_select %p159, %s160, %s161
      %p165 = pneg %p159
      %p166 = scmp.eq.s32.totalorder %s17, 1
      %p167 = por %p165, %p166
      %p168 = scmp.ne.s32.totalorder %s160, %s163
      %p169 = scmp.eq.s32.totalorder %s17, 0
      %p170 = por %p168, %p169
      %p171 = scmp.ne.s32.totalorder %s160, %s163
      %p172 = scmp.eq.s32.totalorder %s22, 1
      %p173 = por %p171, %p172
      %p174 = scmp.ne.s32.totalorder %s163, %s164
      %p175 = scmp.eq.s32.totalorder %s22, 0
      %p176 = por %p174, %p175
      %p177 = scmp.ne.s32.totalorder %s163, %s164
      %p178 = scmp.eq.s32.totalorder %s23, 1
      %p179 = por %p177, %p178
      %p181 = scmp.ne.s32.totalorder %s164, %s180
      %p182 = scmp.eq.s32.totalorder %s23, 0
      %p183 = por %p181, %p182
      %s184 = ssub.s32 %s24, %s36
      %s185 = ssub.s32 %s25, %s32
      %s186 = sor.u32 %s184, %s185
      %p187 = scmp.eq.s32.totalorder %s186, 0
      %s189 = sadd.s32 %s188, 1
      %s190 = scalar_select %p187, %s188, %s189
      %p193 = pneg %p187
      %p194 = scmp.eq.s32.totalorder %s17, 1
      %p195 = por %p193, %p194
      %p196 = scmp.ne.s32.totalorder %s188, %s191
      %p197 = scmp.eq.s32.totalorder %s17, 0
      %p198 = por %p196, %p197
      %p199 = scmp.ne.s32.totalorder %s188, %s191
      %p200 = scmp.eq.s32.totalorder %s22, 1
      %p201 = por %p199, %p200
      %p202 = scmp.ne.s32.totalorder %s191, %s192
      %p203 = scmp.eq.s32.totalorder %s22, 0
      %p204 = por %p202, %p203
      %p205 = scmp.ne.s32.totalorder %s191, %s192
      %p206 = scmp.eq.s32.totalorder %s23, 1
      %p207 = por %p205, %p206
      %p209 = scmp.ne.s32.totalorder %s192, %s208
      %p210 = scmp.eq.s32.totalorder %s23, 0
      %p211 = por %p209, %p210
      %s212 = ssub.s32 %s24, %s36
      %s213 = ssub.s32 %s25, %s32
      %s214 = sor.u32 %s212, %s213
      %p215 = scmp.eq.s32.totalorder %s214, 0
      %s217 = sadd.s32 %s216, 1
      %s218 = scalar_select %p215, %s216, %s217
      %p221 = pneg %p215
      %p222 = scmp.eq.s32.totalorder %s17, 1
      %p223 = por %p221, %p222
      %p224 = scmp.ne.s32.totalorder %s216, %s219
      %p225 = scmp.eq.s32.totalorder %s17, 0
      %p226 = por %p224, %p225
      %p227 = scmp.ne.s32.totalorder %s216, %s219
      %p228 = scmp.eq.s32.totalorder %s22, 1
      %p229 = por %p227, %p228
      %p230 = scmp.ne.s32.totalorder %s219, %s220
      %p231 = scmp.eq.s32.totalorder %s22, 0
      %p232 = por %p230, %p231
      %p233 = scmp.ne.s32.totalorder %s219, %s220
      %p234 = scmp.eq.s32.totalorder %s23, 1
      %p235 = por %p233, %p234
      %p237 = scmp.ne.s32.totalorder %s220, %s236
      %p238 = scmp.eq.s32.totalorder %s23, 0
      %p239 = por %p237, %p238
      %p240 = scmp.le.s32.totalorder 1, %s17
      %p241 = scmp.lt.s32.totalorder %s17, 3
      %p242 = pnand %p240, %p241
      %p243 = pneg %p242
      // Predicated region
      $region9: #{vector_quantizer_ema_forward.1} parent=5 // pred_check
        _
      $region10: #{vector_quantizer_ema_forward.1} parent=5 // pred_check_branch
        %245 = sbr.rel (%p242) target = $region12
      $region11: #{vector_quantizer_ema_forward.1} parent=5 // pred_region
        %s246 = ssub.s32 %s17, 1
        // Predicated region
        $region13: #{vector_quantizer_ema_forward.1} parent=11 // pred_check
          %p247 = pneg %p78
        $region14: #{vector_quantizer_ema_forward.1} parent=11 // pred_check_branch
          %249 = sbr.rel (%p247) target = $region16
        $region15: #{vector_quantizer_ema_forward.1} parent=11 // pred_region
          _
        $region16: #{vector_quantizer_ema_forward.1} parent=11 // pred_fallthru
          _
        // Predicated region
        $region17: #{vector_quantizer_ema_forward.1} parent=11 // pred_check
          %p250 = pneg %p99
        $region18: #{vector_quantizer_ema_forward.1} parent=11 // pred_check_branch
          %252 = sbr.rel (%p250) target = $region20
        $region19: #{vector_quantizer_ema_forward.1} parent=11 // pred_region
          _
        $region20: #{vector_quantizer_ema_forward.1} parent=11 // pred_fallthru
          _
        // Predicated region
        $region21: #{vector_quantizer_ema_forward.1} parent=11 // pred_check
          %p253 = pneg %p120
        $region22: #{vector_quantizer_ema_forward.1} parent=11 // pred_check_branch
          %255 = sbr.rel (%p253) target = $region24
        $region23: #{vector_quantizer_ema_forward.1} parent=11 // pred_region
          _
        $region24: #{vector_quantizer_ema_forward.1} parent=11 // pred_fallthru
          _
      $region12: #{vector_quantizer_ema_forward.1} parent=5 // pred_fallthru
        _
      %p256 = scmp.lt.s32.totalorder %s17, 2
      // Predicated region
      $region25: #{vector_quantizer_ema_forward.1} parent=5 // pred_check
        %p257 = pneg %p256
      $region26: #{vector_quantizer_ema_forward.1} parent=5 // pred_check_branch
        %259 = sbr.rel (%p257) target = $region28
      $region27: #{vector_quantizer_ema_forward.1} parent=5 // pred_region
        // Predicated region
        $region29: #{vector_quantizer_ema_forward.1} parent=27 // pred_check
          %p260 = pneg %p51
        $region30: #{vector_quantizer_ema_forward.1} parent=27 // pred_check_branch
          %262 = sbr.rel (%p260) target = $region32
        $region31: #{vector_quantizer_ema_forward.1} parent=27 // pred_region
          %s263 = smul.u32 2, %s25
          %p264 = scmp.lt.s32.totalorder %s24, 1
          %s265 = scalar_select %p264, %s24, 1
          %p266 = scmp.lt.s32.totalorder %s263, 1
          %s267 = scalar_select %p266, %s263, 1
          %s268 = smul.addr %s265, 4
          %s269 = sadd.s32 %s267, %s268
          %s270 = smul.addr %s269, 8
          %s271 = scalar_lea.vmem %s0, %s270
          %s272 = smul.u32 2, %s25
        $region32: #{vector_quantizer_ema_forward.1} parent=27 // pred_fallthru
          _
      $region28: #{vector_quantizer_ema_forward.1} parent=5 // pred_fallthru
        _
      %p273 = scmp.le.s32.totalorder 1, %s17
      %p274 = scmp.lt.s32.totalorder %s17, 3
      %p275 = pnand %p273, %p274
      %p276 = pneg %p275
      // Predicated region
      $region33: #{vector_quantizer_ema_forward.1} parent=5 // pred_check
        _
      $region34: #{vector_quantizer_ema_forward.1} parent=5 // pred_check_branch
        %278 = sbr.rel (%p275) target = $region36
      $region35: #{vector_quantizer_ema_forward.1} parent=5 // pred_region
        %s279 = ssub.s32 %s17, 1
        %s280 = smul.u32 2, %s27
        %p281 = scmp.lt.s32.totalorder %s26, 1
        %s282 = scalar_select %p281, %s26, 1
        %p283 = scmp.lt.s32.totalorder %s280, 1
        %s284 = scalar_select %p283, %s280, 1
        %s285 = smul.addr %s282, 4
        %s286 = sadd.s32 %s284, %s285
        %s287 = smul.addr %s286, 8
        %s288 = scalar_lea.vmem %s0, %s287
        %p289 = pneg %p57
        %p290 = pneg %p54
        %p291 = pneg %p78
        %p292 = pneg %p75
        %p293 = pneg %p99
        %p294 = pneg %p96
        %p295 = pneg %p120
        %p296 = pneg %p117
        %p297 = pneg %p148
        %p298 = pneg %p145
        %s299 = smul.u32 2, %s27
        %p300 = scmp.lt.s32.totalorder %s26, 1
        %s301 = scalar_select %p300, %s26, 1
        %p302 = scmp.lt.s32.totalorder %s299, 1
        %s303 = scalar_select %p302, %s299, 1
        %s304 = smul.addr %s301, 4
        %s305 = sadd.s32 %s303, %s304
        %s306 = smul.addr %s305, 8
        %s307 = scalar_lea.vmem %s4, %s306
        %p308 = pneg %p176
        %p309 = pneg %p173
        %s310 = sand.u32 %s163, 1
        %s311 = scalar_lea.sflag [#allocation3], %s310
        %s312 = sand.u32 %s163, 1
        %s313 = smul.addr %s312, 2
        %s314 = scalar_lea.vmem [#allocation2], %s313
        %p315 = pneg %p204
        %p316 = pneg %p201
        %s317 = smul.u32 2, %s27
        %p318 = scmp.lt.s32.totalorder %s26, 1
        %s319 = scalar_select %p318, %s26, 1
        %p320 = scmp.lt.s32.totalorder %s317, 1
        %s321 = scalar_select %p320, %s317, 1
        %s322 = smul.addr %s319, 2
        %s323 = sadd.s32 %s321, %s322
        %s324 = scalar_lea.vmem %s6, %s323
        %p325 = pneg %p232
        %p326 = pneg %p229
        %p327 = scmp.lt.s32.totalorder %s26, 1
        %s328 = scalar_select %p327, %s26, 1
        %p329 = scmp.lt.s32.totalorder %s27, 0
        %s330 = scalar_select %p329, %s27, 0
        %s331 = smul.addr %s330, 16
        %s332 = smul.addr %s328, 16
        %s333 = sadd.s32 %s331, %s332
        %s334 = smul.addr %s333, 8
        %s335 = scalar_lea.vmem %s7, %s334
        %s336 = smul.u32 2, %s27
        %p337 = scmp.lt.s32.totalorder %s26, 1
        %s338 = scalar_select %p337, %s26, 1
        %p339 = scmp.lt.s32.totalorder %s336, 1
        %s340 = scalar_select %p339, %s336, 1
        %s341 = smul.addr %s338, 4
        %s342 = sadd.s32 %s340, %s341
        %s343 = smul.addr %s342, 8
        %s344 = scalar_lea.vmem %s0, %s343
        %s345 = smul.u32 2, %s27
        %s346 = smul.u32 2, %s27
        %p347 = scmp.lt.s32.totalorder %s26, 1
        %s348 = scalar_select %p347, %s26, 1
        %p349 = scmp.lt.s32.totalorder %s346, 1
        %s350 = scalar_select %p349, %s346, 1
        %s351 = smul.addr %s348, 4
        %s352 = sadd.s32 %s350, %s351
        %s353 = smul.addr %s352, 8
        %s354 = scalar_lea.vmem %s4, %s353
        %s355 = smul.u32 2, %s27
        %s356 = smul.u32 2, %s27
        %s357 = smul.u32 2, %s27
        %p358 = scmp.lt.s32.totalorder %s26, 1
        %s359 = scalar_select %p358, %s26, 1
        %p360 = scmp.lt.s32.totalorder %s357, 1
        %s361 = scalar_select %p360, %s357, 1
        %s362 = smul.addr %s359, 2
        %s363 = sadd.s32 %s361, %s362
        %s364 = scalar_lea.vmem %s6, %s363
        %s365 = smul.u32 2, %s27
        %p366 = scmp.lt.s32.totalorder %s26, 1
        %s367 = scalar_select %p366, %s26, 1
        %p368 = scmp.lt.s32.totalorder %s27, 0
        %s369 = scalar_select %p368, %s27, 0
        %s370 = smul.addr %s369, 16
        %s371 = smul.addr %s367, 16
        %s372 = sadd.s32 %s370, %s371
        %s373 = smul.addr %s372, 8
        %s374 = scalar_lea.vmem %s7, %s373
        %v375 = vld [vmem:[%s344] sm:$0xff]
        %v376 = vld [vmem:[%s344 + $0x8] sm:$0xff]
        %v377 = vld [vmem:[%s344 + $0x10] sm:$0xff]
        %v378 = vld [vmem:[%s344 + $0x18] sm:$0xff]
        %v379 = vld [vmem:[%s1] sm:$0xff]
        %v380 = vld [vmem:[%s1 + $0x8] sm:$0xff]
        %v381 = vld [vmem:[%s1 + $0x10] sm:$0xff]
        %v382 = vld [vmem:[%s1 + $0x18] sm:$0xff]
        %v383 = vld [vmem:[%s1 + $0x20] sm:$0xff]
        %v384 = vld [vmem:[%s1 + $0x28] sm:$0xff]
        %v385 = vld [vmem:[%s1 + $0x30] sm:$0xff]
        %v386 = vld [vmem:[%s1 + $0x38] sm:$0xff]
        %v387 = vld [vmem:[%s1 + $0x40] sm:$0xff]
        %v388 = vld [vmem:[%s1 + $0x48] sm:$0xff]
        %v389 = vld [vmem:[%s1 + $0x50] sm:$0xff]
        %v390 = vld [vmem:[%s1 + $0x58] sm:$0xff]
        %v391 = vld [vmem:[%s1 + $0x60] sm:$0xff]
        %v392 = vld [vmem:[%s1 + $0x68] sm:$0xff]
        %v393 = vld [vmem:[%s1 + $0x70] sm:$0xff]
        %v394 = vld [vmem:[%s1 + $0x78] sm:$0xff]
        %v395 = vld [vmem:[%s2] sm:$0xff]
        %v396 = vld [vmem:[%s2 + $0x8] sm:$0xff]
        %v397 = vld [vmem:[%s3] sm:$0xff]
        %v398 = vld [vmem:[%s3 + $0x8] sm:$0xff]
        %v399 = vld [vmem:[%s3 + $0x10] sm:$0xff]
        %v400 = vld [vmem:[%s3 + $0x18] sm:$0xff]
        %v401 = vld [vmem:[%s3 + $0x20] sm:$0xff]
        %v402 = vld [vmem:[%s3 + $0x28] sm:$0xff]
        %v403 = vld [vmem:[%s3 + $0x30] sm:$0xff]
        %v404 = vld [vmem:[%s3 + $0x38] sm:$0xff]
        %v405 = vld [vmem:[%s3 + $0x40] sm:$0xff]
        %v406 = vld [vmem:[%s3 + $0x48] sm:$0xff]
        %v407 = vld [vmem:[%s3 + $0x50] sm:$0xff]
        %v408 = vld [vmem:[%s3 + $0x58] sm:$0xff]
        %v409 = vld [vmem:[%s3 + $0x60] sm:$0xff]
        %v410 = vld [vmem:[%s3 + $0x68] sm:$0xff]
        %v411 = vld [vmem:[%s3 + $0x70] sm:$0xff]
        %v412 = vld [vmem:[%s3 + $0x78] sm:$0xff]
        %vm413 = vcmask 130048
        %v415 = vsel %vm413, %v379, 0
        %v418 = vsel %vm413, %v380, 0
        %v421 = vsel %vm413, %v381, 0
        %v424 = vsel %vm413, %v382, 0
        %v427 = vsel %vm413, %v383, 0
        %v430 = vsel %vm413, %v384, 0
        %v433 = vsel %vm413, %v385, 0
        %v436 = vsel %vm413, %v386, 0
        %v439 = vsel %vm413, %v387, 0
        %v442 = vsel %vm413, %v388, 0
        %v445 = vsel %vm413, %v389, 0
        %v448 = vsel %vm413, %v390, 0
        %v451 = vsel %vm413, %v391, 0
        %v454 = vsel %vm413, %v392, 0
        %v457 = vsel %vm413, %v393, 0
        %v460 = vsel %vm413, %v394, 0
        %462 = vmatprep.subr.mxu0 %v376
        %463 = vmatpush1.msra.mxu0 %v375
        %464 = vmatprep.subr.mxu0 %v378
        %465 = vmatpush1.msra.mxu0 %v377
        %466 = vmatprep.subr.mxu0 0.0
        %467 = vmatpush1.msra.mxu0 0.0
        %468 = vmatprep.subr.mxu0 0.0
        %469 = vmatpush1.msra.mxu0 0.0
        %470 = vmatprep.subr.mxu0 0.0
        %471 = vmatpush1.msra.mxu0 0.0
        %472 = vmatprep.subr.mxu0 0.0
        %473 = vmatpush1.msra.mxu0 0.0
        %474 = vmatprep.subr.mxu0 0.0
        %475 = vmatpush1.msra.mxu0 0.0
        %476 = vmatprep.subr.mxu0 0.0
        %477 = vmatpush1.msra.mxu0 0.0
        %478 = vmatprep.subr.mxu0 0.0
        %479 = vmatpush1.msra.mxu0 0.0
        %480 = vmatprep.subr.mxu0 0.0
        %481 = vmatpush1.msra.mxu0 0.0
        %482 = vmatprep.subr.mxu0 0.0
        %483 = vmatpush1.msra.mxu0 0.0
        %484 = vmatprep.subr.mxu0 0.0
        %485 = vmatpush1.msra.mxu0 0.0
        %486 = vmatprep.subr.mxu0 0.0
        %487 = vmatpush1.msra.mxu0 0.0
        %488 = vmatprep.subr.mxu0 0.0
        %489 = vmatpush1.msra.mxu0 0.0
        %490 = vmatprep.subr.mxu0 0.0
        %491 = vmatpush1.msra.mxu0 0.0
        %492 = vmatprep.subr.mxu0 0.0
        %493 = vmatpush1.msra.mxu0 0.0
        %494 = vmatprep.subr.mxu0 0.0
        %495 = vmatpush1.msra.mxu0 0.0
        %496 = vmatprep.subr.mxu0 0.0
        %497 = vmatpush1.msra.mxu0 0.0
        %498 = vmatprep.subr.mxu0 0.0
        %499 = vmatpush1.msra.mxu0 0.0
        %500 = vmatprep.subr.mxu0 0.0
        %501 = vmatpush1.msra.mxu0 0.0
        %502 = vmatprep.subr.mxu0 0.0
        %503 = vmatpush1.msra.mxu0 0.0
        %504 = vmatprep.subr.mxu0 0.0
        %505 = vmatpush1.msra.mxu0 0.0
        %506 = vmatprep.subr.mxu0 0.0
        %507 = vmatpush1.msra.mxu0 0.0
        %508 = vmatprep.subr.mxu0 0.0
        %509 = vmatpush1.msra.mxu0 0.0
        %510 = vmatprep.subr.mxu0 0.0
        %511 = vmatpush1.msra.mxu0 0.0
        %512 = vmatprep.subr.mxu0 0.0
        %513 = vmatpush1.msra.mxu0 0.0
        %514 = vmatprep.subr.mxu0 0.0
        %515 = vmatpush1.msra.mxu0 0.0
        %516 = vmatprep.subr.mxu0 0.0
        %517 = vmatpush1.msra.mxu0 0.0
        %518 = vmatprep.subr.mxu0 0.0
        %519 = vmatpush1.msra.mxu0 0.0
        %520 = vmatprep.subr.mxu0 0.0
        %521 = vmatpush1.msra.mxu0 0.0
        %522 = vmatprep.subr.mxu0 0.0
        %523 = vmatpush1.msra.mxu0 0.0
        %524 = vmatprep.subr.mxu0 0.0
        %525 = vmatpush1.msra.mxu0 0.0
        %526 = vmatprep.mubr.f32.mxu0 0.0
        %527 = vmatmul.mubr.f32.gmra.mrb[0].mxu0 %v415
        %v528 = vpop.f32.mrb[0].mxu0
        %v529 = vadd.f32 0.0, %v528
        %v530 = vpop.f32.mrb[0].mxu0
        %v531 = vadd.f32 0.0, %v530
        %532 = vmatprep.mubr.f32.mxu0 0.0
        %533 = vmatmul.mubr.f32.gmra.mrb[0].mxu0 %v418
        %v534 = vpop.f32.mrb[0].mxu0
        %v535 = vadd.f32 0.0, %v534
        %v536 = vpop.f32.mrb[0].mxu0
        %v537 = vadd.f32 0.0, %v536
        %538 = vmatprep.mubr.f32.mxu0 0.0
        %539 = vmatmul.mubr.f32.gmra.mrb[0].mxu0 %v421
        %v540 = vpop.f32.mrb[0].mxu0
        %v541 = vadd.f32 0.0, %v540
        %v542 = vpop.f32.mrb[0].mxu0
        %v543 = vadd.f32 0.0, %v542
        %544 = vmatprep.mubr.f32.mxu0 0.0
        %545 = vmatmul.mubr.f32.gmra.mrb[0].mxu0 %v424
        %v546 = vpop.f32.mrb[0].mxu0
        %v547 = vadd.f32 0.0, %v546
        %v548 = vpop.f32.mrb[0].mxu0
        %v549 = vadd.f32 0.0, %v548
        %550 = vmatprep.mubr.f32.mxu0 0.0
        %551 = vmatmul.mubr.f32.gmra.mrb[0].mxu0 %v427
        %v552 = vpop.f32.mrb[0].mxu0
        %v553 = vadd.f32 0.0, %v552
        %v554 = vpop.f32.mrb[0].mxu0
        %v555 = vadd.f32 0.0, %v554
        %556 = vmatprep.mubr.f32.mxu0 0.0
        %557 = vmatmul.mubr.f32.gmra.mrb[0].mxu0 %v430
        %v558 = vpop.f32.mrb[0].mxu0
        %v559 = vadd.f32 0.0, %v558
        %v560 = vpop.f32.mrb[0].mxu0
        %v561 = vadd.f32 0.0, %v560
        %562 = vmatprep.mubr.f32.mxu0 0.0
        %563 = vmatmul.mubr.f32.gmra.mrb[0].mxu0 %v433
        %v564 = vpop.f32.mrb[0].mxu0
        %v565 = vadd.f32 0.0, %v564
        %v566 = vpop.f32.mrb[0].mxu0
        %v567 = vadd.f32 0.0, %v566
        %568 = vmatprep.mubr.f32.mxu0 0.0
        %569 = vmatmul.mubr.f32.gmra.mrb[0].mxu0 %v436
        %v570 = vpop.f32.mrb[0].mxu0
        %v571 = vadd.f32 0.0, %v570
        %v572 = vpop.f32.mrb[0].mxu0
        %v573 = vadd.f32 0.0, %v572
        %574 = vmatprep.mubr.f32.mxu0 0.0
        %575 = vmatmul.mubr.f32.gmra.mrb[0].mxu0 %v439
        %v576 = vpop.f32.mrb[0].mxu0
        %v577 = vadd.f32 0.0, %v576
        %v578 = vpop.f32.mrb[0].mxu0
        %v579 = vadd.f32 0.0, %v578
        %580 = vmatprep.mubr.f32.mxu0 0.0
        %581 = vmatmul.mubr.f32.gmra.mrb[0].mxu0 %v442
        %v582 = vpop.f32.mrb[0].mxu0
        %v583 = vadd.f32 0.0, %v582
        %v584 = vpop.f32.mrb[0].mxu0
        %v585 = vadd.f32 0.0, %v584
        %586 = vmatprep.mubr.f32.mxu0 0.0
        %587 = vmatmul.mubr.f32.gmra.mrb[0].mxu0 %v445
        %v588 = vpop.f32.mrb[0].mxu0
        %v589 = vadd.f32 0.0, %v588
        %v590 = vpop.f32.mrb[0].mxu0
        %v591 = vadd.f32 0.0, %v590
        %592 = vmatprep.mubr.f32.mxu0 0.0
        %593 = vmatmul.mubr.f32.gmra.mrb[0].mxu0 %v448
        %v594 = vpop.f32.mrb[0].mxu0
        %v595 = vadd.f32 0.0, %v594
        %v596 = vpop.f32.mrb[0].mxu0
        %v597 = vadd.f32 0.0, %v596
        %598 = vmatprep.mubr.f32.mxu0 0.0
        %599 = vmatmul.mubr.f32.gmra.mrb[0].mxu0 %v451
        %v600 = vpop.f32.mrb[0].mxu0
        %v601 = vadd.f32 0.0, %v600
        %v602 = vpop.f32.mrb[0].mxu0
        %v603 = vadd.f32 0.0, %v602
        %604 = vmatprep.mubr.f32.mxu0 0.0
        %605 = vmatmul.mubr.f32.gmra.mrb[0].mxu0 %v454
        %v606 = vpop.f32.mrb[0].mxu0
        %v607 = vadd.f32 0.0, %v606
        %v608 = vpop.f32.mrb[0].mxu0
        %v609 = vadd.f32 0.0, %v608
        %610 = vmatprep.mubr.f32.mxu0 0.0
        %611 = vmatmul.mubr.f32.gmra.mrb[0].mxu0 %v457
        %v612 = vpop.f32.mrb[0].mxu0
        %v613 = vadd.f32 0.0, %v612
        %v614 = vpop.f32.mrb[0].mxu0
        %v615 = vadd.f32 0.0, %v614
        %616 = vmatprep.mubr.f32.mxu0 0.0
        %617 = vmatmul.mubr.f32.gmra.mrb[0].mxu0 %v460
        %v618 = vpop.f32.mrb[0].mxu0
        %v619 = vadd.f32 0.0, %v618
        %v620 = vpop.f32.mrb[0].mxu0
        %v621 = vadd.f32 0.0, %v620
        %622 = vdwg.mxu0
        %v623 = vmul.f32 %v529, 2.0
        %v624 = vmul.f32 %v531, 2.0
        %v625 = vmul.f32 %v535, 2.0
        %v626 = vmul.f32 %v537, 2.0
        %v627 = vmul.f32 %v541, 2.0
        %v628 = vmul.f32 %v543, 2.0
        %v629 = vmul.f32 %v547, 2.0
        %v630 = vmul.f32 %v549, 2.0
        %v631 = vmul.f32 %v553, 2.0
        %v632 = vmul.f32 %v555, 2.0
        %v633 = vmul.f32 %v559, 2.0
        %v634 = vmul.f32 %v561, 2.0
        %v635 = vmul.f32 %v565, 2.0
        %v636 = vmul.f32 %v567, 2.0
        %v637 = vmul.f32 %v571, 2.0
        %v638 = vmul.f32 %v573, 2.0
        %v639 = vmul.f32 %v577, 2.0
        %v640 = vmul.f32 %v579, 2.0
        %v641 = vmul.f32 %v583, 2.0
        %v642 = vmul.f32 %v585, 2.0
        %v643 = vmul.f32 %v589, 2.0
        %v644 = vmul.f32 %v591, 2.0
        %v645 = vmul.f32 %v595, 2.0
        %v646 = vmul.f32 %v597, 2.0
        %v647 = vmul.f32 %v601, 2.0
        %v648 = vmul.f32 %v603, 2.0
        %v649 = vmul.f32 %v607, 2.0
        %v650 = vmul.f32 %v609, 2.0
        %v651 = vmul.f32 %v613, 2.0
        %v652 = vmul.f32 %v615, 2.0
        %v653 = vmul.f32 %v619, 2.0
        %v654 = vmul.f32 %v621, 2.0
        %656 = vset.pattern.permute.xlu0 0
        %657 = vperm.xlu0 %656, %v397
        %v658 = vpop.permute.xlu0 %657
        %661 = vset.pattern.permute.xlu0 0
        %662 = vperm.xlu0 %661, %v398
        %v663 = vpop.permute.xlu0 %662
        %666 = vset.pattern.permute.xlu0 0
        %667 = vperm.xlu0 %666, %v399
        %v668 = vpop.permute.xlu0 %667
        %671 = vset.pattern.permute.xlu0 0
        %672 = vperm.xlu0 %671, %v400
        %v673 = vpop.permute.xlu0 %672
        %676 = vset.pattern.permute.xlu0 0
        %677 = vperm.xlu0 %676, %v401
        %v678 = vpop.permute.xlu0 %677
        %681 = vset.pattern.permute.xlu0 0
        %682 = vperm.xlu0 %681, %v402
        %v683 = vpop.permute.xlu0 %682
        %686 = vset.pattern.permute.xlu0 0
        %687 = vperm.xlu0 %686, %v403
        %v688 = vpop.permute.xlu0 %687
        %691 = vset.pattern.permute.xlu0 0
        %692 = vperm.xlu0 %691, %v404
        %v693 = vpop.permute.xlu0 %692
        %696 = vset.pattern.permute.xlu0 0
        %697 = vperm.xlu0 %696, %v405
        %v698 = vpop.permute.xlu0 %697
        %701 = vset.pattern.permute.xlu0 0
        %702 = vperm.xlu0 %701, %v406
        %v703 = vpop.permute.xlu0 %702
        %706 = vset.pattern.permute.xlu0 0
        %707 = vperm.xlu0 %706, %v407
        %v708 = vpop.permute.xlu0 %707
        %711 = vset.pattern.permute.xlu0 0
        %712 = vperm.xlu0 %711, %v408
        %v713 = vpop.permute.xlu0 %712
        %716 = vset.pattern.permute.xlu0 0
        %717 = vperm.xlu0 %716, %v409
        %v718 = vpop.permute.xlu0 %717
        %721 = vset.pattern.permute.xlu0 0
        %722 = vperm.xlu0 %721, %v410
        %v723 = vpop.permute.xlu0 %722
        %726 = vset.pattern.permute.xlu0 0
        %727 = vperm.xlu0 %726, %v411
        %v728 = vpop.permute.xlu0 %727
        %731 = vset.pattern.permute.xlu0 0
        %732 = vperm.xlu0 %731, %v412
        %v733 = vpop.permute.xlu0 %732
        %v735 = vsub.f32 %v658, %v623
        %v736 = vsub.f32 %v658, %v624
        %v737 = vsub.f32 %v663, %v625
        %v738 = vsub.f32 %v663, %v626
        %v739 = vsub.f32 %v668, %v627
        %v740 = vsub.f32 %v668, %v628
        %v741 = vsub.f32 %v673, %v629
        %v742 = vsub.f32 %v673, %v630
        %v743 = vsub.f32 %v678, %v631
        %v744 = vsub.f32 %v678, %v632
        %v745 = vsub.f32 %v683, %v633
        %v746 = vsub.f32 %v683, %v634
        %v747 = vsub.f32 %v688, %v635
        %v748 = vsub.f32 %v688, %v636
        %v749 = vsub.f32 %v693, %v637
        %v750 = vsub.f32 %v693, %v638
        %v751 = vsub.f32 %v698, %v639
        %v752 = vsub.f32 %v698, %v640
        %v753 = vsub.f32 %v703, %v641
        %v754 = vsub.f32 %v703, %v642
        %v755 = vsub.f32 %v708, %v643
        %v756 = vsub.f32 %v708, %v644
        %v757 = vsub.f32 %v713, %v645
        %v758 = vsub.f32 %v713, %v646
        %v759 = vsub.f32 %v718, %v647
        %v760 = vsub.f32 %v718, %v648
        %v761 = vsub.f32 %v723, %v649
        %v762 = vsub.f32 %v723, %v650
        %v763 = vsub.f32 %v728, %v651
        %v764 = vsub.f32 %v728, %v652
        %v765 = vsub.f32 %v733, %v653
        %v766 = vsub.f32 %v733, %v654
        %v767 = vmin.f32 %v735, %v739
        %v768 = vmin.f32 %v737, %v741
        %v769 = vmin.f32 %v767, %v743
        %v770 = vmin.f32 %v768, %v745
        %v771 = vmin.f32 %v769, %v747
        %v772 = vmin.f32 %v770, %v749
        %v773 = vmin.f32 %v771, %v751
        %v774 = vmin.f32 %v772, %v753
        %v775 = vmin.f32 %v773, %v755
        %v776 = vmin.f32 %v774, %v757
        %v777 = vmin.f32 %v775, %v759
        %v778 = vmin.f32 %v776, %v761
        %v779 = vmin.f32 %v777, %v763
        %v780 = vmin.f32 %v778, %v765
        %v781 = vmin.f32 %v779, %v780
        %v782 = vrot.slane %v781, 4
        %v783 = vmin.f32 %v781, %v782
        %v784 = vrot.slane %v783, 2
        %v785 = vmin.f32 %v783, %v784
        %v786 = vrot.slane %v785, 1
        %v787 = vmin.f32 %v785, %v786
        %v788 = vmin.f32 %v736, %v740
        %v789 = vmin.f32 %v738, %v742
        %v790 = vmin.f32 %v788, %v744
        %v791 = vmin.f32 %v789, %v746
        %v792 = vmin.f32 %v790, %v748
        %v793 = vmin.f32 %v791, %v750
        %v794 = vmin.f32 %v792, %v752
        %v795 = vmin.f32 %v793, %v754
        %v796 = vmin.f32 %v794, %v756
        %v797 = vmin.f32 %v795, %v758
        %v798 = vmin.f32 %v796, %v760
        %v799 = vmin.f32 %v797, %v762
        %v800 = vmin.f32 %v798, %v764
        %v801 = vmin.f32 %v799, %v766
        %v802 = vmin.f32 %v800, %v801
        %v803 = vrot.slane %v802, 4
        %v804 = vmin.f32 %v802, %v803
        %v805 = vrot.slane %v804, 2
        %v806 = vmin.f32 %v804, %v805
        %v807 = vrot.slane %v806, 1
        %v808 = vmin.f32 %v806, %v807
        %v809 = vlaneseq
        %v810 = vshrl.u32 %v809, 7
        %v811 = vadd.s32 %v810, 8
        %v812 = vadd.s32 %v810, 16
        %v813 = vadd.s32 %v810, 24
        %v814 = vadd.s32 %v810, 32
        %v815 = vadd.s32 %v810, 40
        %v816 = vadd.s32 %v810, 48
        %v817 = vadd.s32 %v810, 56
        %v818 = vadd.s32 %v810, 64
        %v819 = vadd.s32 %v810, 72
        %v820 = vadd.s32 %v810, 80
        %v821 = vadd.s32 %v810, 88
        %v822 = vadd.s32 %v810, 96
        %v823 = vadd.s32 %v810, 104
        %v824 = vadd.s32 %v810, 112
        %v825 = vadd.s32 %v810, 120
        %vm826 = vcmp.eq.f32.partialorder %v735, %v787
        %vm827 = vcmp.eq.f32.partialorder %v736, %v808
        %vm828 = vcmp.eq.f32.partialorder %v737, %v787
        %vm829 = vcmp.eq.f32.partialorder %v738, %v808
        %vm830 = vcmp.eq.f32.partialorder %v739, %v787
        %vm831 = vcmp.eq.f32.partialorder %v740, %v808
        %vm832 = vcmp.eq.f32.partialorder %v741, %v787
        %vm833 = vcmp.eq.f32.partialorder %v742, %v808
        %vm834 = vcmp.eq.f32.partialorder %v743, %v787
        %vm835 = vcmp.eq.f32.partialorder %v744, %v808
        %vm836 = vcmp.eq.f32.partialorder %v745, %v787
        %vm837 = vcmp.eq.f32.partialorder %v746, %v808
        %vm838 = vcmp.eq.f32.partialorder %v747, %v787
        %vm839 = vcmp.eq.f32.partialorder %v748, %v808
        %vm840 = vcmp.eq.f32.partialorder %v749, %v787
        %vm841 = vcmp.eq.f32.partialorder %v750, %v808
        %vm842 = vcmp.eq.f32.partialorder %v751, %v787
        %vm843 = vcmp.eq.f32.partialorder %v752, %v808
        %vm844 = vcmp.eq.f32.partialorder %v753, %v787
        %vm845 = vcmp.eq.f32.partialorder %v754, %v808
        %vm846 = vcmp.eq.f32.partialorder %v755, %v787
        %vm847 = vcmp.eq.f32.partialorder %v756, %v808
        %vm848 = vcmp.eq.f32.partialorder %v757, %v787
        %vm849 = vcmp.eq.f32.partialorder %v758, %v808
        %vm850 = vcmp.eq.f32.partialorder %v759, %v787
        %vm851 = vcmp.eq.f32.partialorder %v760, %v808
        %vm852 = vcmp.eq.f32.partialorder %v761, %v787
        %vm853 = vcmp.eq.f32.partialorder %v762, %v808
        %vm854 = vcmp.eq.f32.partialorder %v763, %v787
        %vm855 = vcmp.eq.f32.partialorder %v764, %v808
        %vm856 = vcmp.eq.f32.partialorder %v765, %v787
        %vm857 = vcmp.eq.f32.partialorder %v766, %v808
        %v858 = vsel %vm826, %v810, 128
        %v859 = vsel %vm827, %v810, 128
        %v860 = vsel %vm828, %v811, 128
        %v861 = vsel %vm829, %v811, 128
        %v862 = vsel %vm830, %v812, 128
        %v863 = vsel %vm831, %v812, 128
        %v864 = vsel %vm832, %v813, 128
        %v865 = vsel %vm833, %v813, 128
        %v866 = vsel %vm834, %v814, 128
        %v867 = vsel %vm835, %v814, 128
        %v868 = vsel %vm836, %v815, 128
        %v869 = vsel %vm837, %v815, 128
        %v870 = vsel %vm838, %v816, 128
        %v871 = vsel %vm839, %v816, 128
        %v872 = vsel %vm840, %v817, 128
        %v873 = vsel %vm841, %v817, 128
        %v874 = vsel %vm842, %v818, 128
        %v875 = vsel %vm843, %v818, 128
        %v876 = vsel %vm844, %v819, 128
        %v877 = vsel %vm845, %v819, 128
        %v878 = vsel %vm846, %v820, 128
        %v879 = vsel %vm847, %v820, 128
        %v880 = vsel %vm848, %v821, 128
        %v881 = vsel %vm849, %v821, 128
        %v882 = vsel %vm850, %v822, 128
        %v883 = vsel %vm851, %v822, 128
        %v884 = vsel %vm852, %v823, 128
        %v885 = vsel %vm853, %v823, 128
        %v886 = vsel %vm854, %v824, 128
        %v887 = vsel %vm855, %v824, 128
        %v888 = vsel %vm856, %v825, 128
        %v889 = vsel %vm857, %v825, 128
        %vm890 = vcmp.lt.s32.totalorder %v858, %v862
        %v891 = vsel %vm890, %v858, %v862
        %vm892 = vcmp.lt.s32.totalorder %v860, %v864
        %v893 = vsel %vm892, %v860, %v864
        %vm894 = vcmp.lt.s32.totalorder %v891, %v866
        %v895 = vsel %vm894, %v891, %v866
        %vm896 = vcmp.lt.s32.totalorder %v893, %v868
        %v897 = vsel %vm896, %v893, %v868
        %vm898 = vcmp.lt.s32.totalorder %v895, %v870
        %v899 = vsel %vm898, %v895, %v870
        %vm900 = vcmp.lt.s32.totalorder %v897, %v872
        %v901 = vsel %vm900, %v897, %v872
        %vm902 = vcmp.lt.s32.totalorder %v899, %v874
        %v903 = vsel %vm902, %v899, %v874
        %vm904 = vcmp.lt.s32.totalorder %v901, %v876
        %v905 = vsel %vm904, %v901, %v876
        %vm906 = vcmp.lt.s32.totalorder %v903, %v878
        %v907 = vsel %vm906, %v903, %v878
        %vm908 = vcmp.lt.s32.totalorder %v905, %v880
        %v909 = vsel %vm908, %v905, %v880
        %vm910 = vcmp.lt.s32.totalorder %v907, %v882
        %v911 = vsel %vm910, %v907, %v882
        %vm912 = vcmp.lt.s32.totalorder %v909, %v884
        %v913 = vsel %vm912, %v909, %v884
        %vm914 = vcmp.lt.s32.totalorder %v911, %v886
        %v915 = vsel %vm914, %v911, %v886
        %vm916 = vcmp.lt.s32.totalorder %v913, %v888
        %v917 = vsel %vm916, %v913, %v888
        %vm918 = vcmp.lt.s32.totalorder %v915, %v917
        %v919 = vsel %vm918, %v915, %v917
        %v920 = vrot.slane %v919, 4
        %vm921 = vcmp.lt.s32.totalorder %v919, %v920
        %v922 = vsel %vm921, %v919, %v920
        %v923 = vrot.slane %v922, 2
        %vm924 = vcmp.lt.s32.totalorder %v922, %v923
        %v925 = vsel %vm924, %v922, %v923
        %v926 = vrot.slane %v925, 1
        %vm927 = vcmp.lt.s32.totalorder %v925, %v926
        %v928 = vsel %vm927, %v925, %v926
        %vm929 = vcmp.lt.s32.totalorder %v859, %v863
        %v930 = vsel %vm929, %v859, %v863
        %vm931 = vcmp.lt.s32.totalorder %v861, %v865
        %v932 = vsel %vm931, %v861, %v865
        %vm933 = vcmp.lt.s32.totalorder %v930, %v867
        %v934 = vsel %vm933, %v930, %v867
        %vm935 = vcmp.lt.s32.totalorder %v932, %v869
        %v936 = vsel %vm935, %v932, %v869
        %vm937 = vcmp.lt.s32.totalorder %v934, %v871
        %v938 = vsel %vm937, %v934, %v871
        %vm939 = vcmp.lt.s32.totalorder %v936, %v873
        %v940 = vsel %vm939, %v936, %v873
        %vm941 = vcmp.lt.s32.totalorder %v938, %v875
        %v942 = vsel %vm941, %v938, %v875
        %vm943 = vcmp.lt.s32.totalorder %v940, %v877
        %v944 = vsel %vm943, %v940, %v877
        %vm945 = vcmp.lt.s32.totalorder %v942, %v879
        %v946 = vsel %vm945, %v942, %v879
        %vm947 = vcmp.lt.s32.totalorder %v944, %v881
        %v948 = vsel %vm947, %v944, %v881
        %vm949 = vcmp.lt.s32.totalorder %v946, %v883
        %v950 = vsel %vm949, %v946, %v883
        %vm951 = vcmp.lt.s32.totalorder %v948, %v885
        %v952 = vsel %vm951, %v948, %v885
        %vm953 = vcmp.lt.s32.totalorder %v950, %v887
        %v954 = vsel %vm953, %v950, %v887
        %vm955 = vcmp.lt.s32.totalorder %v952, %v889
        %v956 = vsel %vm955, %v952, %v889
        %vm957 = vcmp.lt.s32.totalorder %v954, %v956
        %v958 = vsel %vm957, %v954, %v956
        %v959 = vrot.slane %v958, 4
        %vm960 = vcmp.lt.s32.totalorder %v958, %v959
        %v961 = vsel %vm960, %v958, %v959
        %v962 = vrot.slane %v961, 2
        %vm963 = vcmp.lt.s32.totalorder %v961, %v962
        %v964 = vsel %vm963, %v961, %v962
        %v965 = vrot.slane %v964, 1
        %vm966 = vcmp.lt.s32.totalorder %v964, %v965
        %v967 = vsel %vm966, %v964, %v965
        %vm968 = vcmp.eq.s32.totalorder %v810, %v928
        %vm969 = vcmp.eq.s32.totalorder %v810, %v967
        %vm970 = vcmp.eq.s32.totalorder %v811, %v928
        %vm971 = vcmp.eq.s32.totalorder %v811, %v967
        %vm972 = vcmp.eq.s32.totalorder %v812, %v928
        %vm973 = vcmp.eq.s32.totalorder %v812, %v967
        %vm974 = vcmp.eq.s32.totalorder %v813, %v928
        %vm975 = vcmp.eq.s32.totalorder %v813, %v967
        %vm976 = vcmp.eq.s32.totalorder %v814, %v928
        %vm977 = vcmp.eq.s32.totalorder %v814, %v967
        %vm978 = vcmp.eq.s32.totalorder %v815, %v928
        %vm979 = vcmp.eq.s32.totalorder %v815, %v967
        %vm980 = vcmp.eq.s32.totalorder %v816, %v928
        %vm981 = vcmp.eq.s32.totalorder %v816, %v967
        %vm982 = vcmp.eq.s32.totalorder %v817, %v928
        %vm983 = vcmp.eq.s32.totalorder %v817, %v967
        %vm984 = vcmp.eq.s32.totalorder %v818, %v928
        %vm985 = vcmp.eq.s32.totalorder %v818, %v967
        %vm986 = vcmp.eq.s32.totalorder %v819, %v928
        %vm987 = vcmp.eq.s32.totalorder %v819, %v967
        %vm988 = vcmp.eq.s32.totalorder %v820, %v928
        %vm989 = vcmp.eq.s32.totalorder %v820, %v967
        %vm990 = vcmp.eq.s32.totalorder %v821, %v928
        %vm991 = vcmp.eq.s32.totalorder %v821, %v967
        %vm992 = vcmp.eq.s32.totalorder %v822, %v928
        %vm993 = vcmp.eq.s32.totalorder %v822, %v967
        %vm994 = vcmp.eq.s32.totalorder %v823, %v928
        %vm995 = vcmp.eq.s32.totalorder %v823, %v967
        %vm996 = vcmp.eq.s32.totalorder %v824, %v928
        %vm997 = vcmp.eq.s32.totalorder %v824, %v967
        %vm998 = vcmp.eq.s32.totalorder %v825, %v928
        %vm999 = vcmp.eq.s32.totalorder %v825, %v967
        %v1000 = vsel %vm968, 1, 0
        %v1001 = vsel %vm969, 1, 0
        %v1002 = vsel %vm970, 1, 0
        %v1003 = vsel %vm971, 1, 0
        %v1004 = vsel %vm972, 1, 0
        %v1005 = vsel %vm973, 1, 0
        %v1006 = vsel %vm974, 1, 0
        %v1007 = vsel %vm975, 1, 0
        %v1008 = vsel %vm976, 1, 0
        %v1009 = vsel %vm977, 1, 0
        %v1010 = vsel %vm978, 1, 0
        %v1011 = vsel %vm979, 1, 0
        %v1012 = vsel %vm980, 1, 0
        %v1013 = vsel %vm981, 1, 0
        %v1014 = vsel %vm982, 1, 0
        %v1015 = vsel %vm983, 1, 0
        %v1016 = vsel %vm984, 1, 0
        %v1017 = vsel %vm985, 1, 0
        %v1018 = vsel %vm986, 1, 0
        %v1019 = vsel %vm987, 1, 0
        %v1020 = vsel %vm988, 1, 0
        %v1021 = vsel %vm989, 1, 0
        %v1022 = vsel %vm990, 1, 0
        %v1023 = vsel %vm991, 1, 0
        %v1024 = vsel %vm992, 1, 0
        %v1025 = vsel %vm993, 1, 0
        %v1026 = vsel %vm994, 1, 0
        %v1027 = vsel %vm995, 1, 0
        %v1028 = vsel %vm996, 1, 0
        %v1029 = vsel %vm997, 1, 0
        %v1030 = vsel %vm998, 1, 0
        %v1031 = vsel %vm999, 1, 0
        %v1032 = vcvt.s32.f32 %v1000
        %v1033 = vcvt.s32.f32 %v1001
        %v1034 = vcvt.s32.f32 %v1002
        %v1035 = vcvt.s32.f32 %v1003
        %v1036 = vcvt.s32.f32 %v1004
        %v1037 = vcvt.s32.f32 %v1005
        %v1038 = vcvt.s32.f32 %v1006
        %v1039 = vcvt.s32.f32 %v1007
        %v1040 = vcvt.s32.f32 %v1008
        %v1041 = vcvt.s32.f32 %v1009
        %v1042 = vcvt.s32.f32 %v1010
        %v1043 = vcvt.s32.f32 %v1011
        %v1044 = vcvt.s32.f32 %v1012
        %v1045 = vcvt.s32.f32 %v1013
        %v1046 = vcvt.s32.f32 %v1014
        %v1047 = vcvt.s32.f32 %v1015
        %v1048 = vcvt.s32.f32 %v1016
        %v1049 = vcvt.s32.f32 %v1017
        %v1050 = vcvt.s32.f32 %v1018
        %v1051 = vcvt.s32.f32 %v1019
        %v1052 = vcvt.s32.f32 %v1020
        %v1053 = vcvt.s32.f32 %v1021
        %v1054 = vcvt.s32.f32 %v1022
        %v1055 = vcvt.s32.f32 %v1023
        %v1056 = vcvt.s32.f32 %v1024
        %v1057 = vcvt.s32.f32 %v1025
        %v1058 = vcvt.s32.f32 %v1026
        %v1059 = vcvt.s32.f32 %v1027
        %v1060 = vcvt.s32.f32 %v1028
        %v1061 = vcvt.s32.f32 %v1029
        %v1062 = vcvt.s32.f32 %v1030
        %v1063 = vcvt.s32.f32 %v1031
        %1064 = vmatprep.subr.mxu0 %v1033
        %1065 = vmatpush1.msra.mxu0 %v1032
        %1066 = vmatprep.subr.mxu0 %v1035
        %1067 = vmatpush1.msra.mxu0 %v1034
        %1068 = vmatprep.subr.mxu0 %v1037
        %1069 = vmatpush1.msra.mxu0 %v1036
        %1070 = vmatprep.subr.mxu0 %v1039
        %1071 = vmatpush1.msra.mxu0 %v1038
        %1072 = vmatprep.subr.mxu0 %v1041
        %1073 = vmatpush1.msra.mxu0 %v1040
        %1074 = vmatprep.subr.mxu0 %v1043
        %1075 = vmatpush1.msra.mxu0 %v1042
        %1076 = vmatprep.subr.mxu0 %v1045
        %1077 = vmatpush1.msra.mxu0 %v1044
        %1078 = vmatprep.subr.mxu0 %v1047
        %1079 = vmatpush1.msra.mxu0 %v1046
        %1080 = vmatprep.subr.mxu0 %v1049
        %1081 = vmatpush1.msra.mxu0 %v1048
        %1082 = vmatprep.subr.mxu0 %v1051
        %1083 = vmatpush1.msra.mxu0 %v1050
        %1084 = vmatprep.subr.mxu0 %v1053
        %1085 = vmatpush1.msra.mxu0 %v1052
        %1086 = vmatprep.subr.mxu0 %v1055
        %1087 = vmatpush1.msra.mxu0 %v1054
        %1088 = vmatprep.subr.mxu0 %v1057
        %1089 = vmatpush1.msra.mxu0 %v1056
        %1090 = vmatprep.subr.mxu0 %v1059
        %1091 = vmatpush1.msra.mxu0 %v1058
        %1092 = vmatprep.subr.mxu0 %v1061
        %1093 = vmatpush1.msra.mxu0 %v1060
        %1094 = vmatprep.subr.mxu0 %v1063
        %1095 = vmatpush1.msra.mxu0 %v1062
        %1096 = vmatprep.subr.mxu0 0.0
        %1097 = vmatpush1.msra.mxu0 0.0
        %1098 = vmatprep.subr.mxu0 0.0
        %1099 = vmatpush1.msra.mxu0 0.0
        %1100 = vmatprep.subr.mxu0 0.0
        %1101 = vmatpush1.msra.mxu0 0.0
        %1102 = vmatprep.subr.mxu0 0.0
        %1103 = vmatpush1.msra.mxu0 0.0
        %1104 = vmatprep.subr.mxu0 0.0
        %1105 = vmatpush1.msra.mxu0 0.0
        %1106 = vmatprep.subr.mxu0 0.0
        %1107 = vmatpush1.msra.mxu0 0.0
        %1108 = vmatprep.subr.mxu0 0.0
        %1109 = vmatpush1.msra.mxu0 0.0
        %1110 = vmatprep.subr.mxu0 0.0
        %1111 = vmatpush1.msra.mxu0 0.0
        %1112 = vmatprep.subr.mxu0 0.0
        %1113 = vmatpush1.msra.mxu0 0.0
        %1114 = vmatprep.subr.mxu0 0.0
        %1115 = vmatpush1.msra.mxu0 0.0
        %1116 = vmatprep.subr.mxu0 0.0
        %1117 = vmatpush1.msra.mxu0 0.0
        %1118 = vmatprep.subr.mxu0 0.0
        %1119 = vmatpush1.msra.mxu0 0.0
        %1120 = vmatprep.subr.mxu0 0.0
        %1121 = vmatpush1.msra.mxu0 0.0
        %1122 = vmatprep.subr.mxu0 0.0
        %1123 = vmatpush1.msra.mxu0 0.0
        %1124 = vmatprep.subr.mxu0 0.0
        %1125 = vmatpush1.msra.mxu0 0.0
        %1126 = vmatprep.subr.mxu0 0.0
        %1127 = vmatpush1.msra.mxu0 0.0
        %1128 = vmatprep.mubr.f32.mxu0 0.0
        %1129 = vmatmul.mubr.f32.gmra.mrb[0].mxu0 %v395
        %v1130 = vpop.f32.mrb[0].mxu0
        %v1131 = vadd.f32 0.0, %v1130
        %v1132 = vpop.f32.mrb[0].mxu0
        %v1133 = vadd.f32 0.0, %v1132
        %1134 = vmatprep.mubr.f32.mxu0 0.0
        %1135 = vmatmul.mubr.f32.gmra.mrb[0].mxu0 %v396
        %v1136 = vpop.f32.mrb[0].mxu0
        %v1137 = vadd.f32 0.0, %v1136
        %v1138 = vpop.f32.mrb[0].mxu0
        %v1139 = vadd.f32 0.0, %v1138
        %1140 = vdwg.mxu0
        %1141 = vst [vmem:[%s354] sm:$0xff] %v1131
        %1142 = vst [vmem:[%s354 + $0x8] sm:$0xff] %v1133
        %1143 = vst [vmem:[%s354 + $0x10] sm:$0xff] %v1137
        %1144 = vst [vmem:[%s354 + $0x18] sm:$0xff] %v1139
        %v1145 = vcombine.low %v928, %v967
        %v1147 = vunpack.c.l.s4 1966171168
        %v1148 = vunpack.c.0.s8 %v1147
        %v1149 = vlaneseq
        %v1150 = vshrl.u32 %v1149, 7
        %v1151 = vsub.s32 %v1148, %v1150
        %v1152 = vrot.slane %v1145, %v1151
        %v1154 = vunpack.c.l.s4 1966171168
        %v1155 = vunpack.c.0.s8 %v1154
        %v1156 = vlaneseq
        %v1157 = vshrl.u32 %v1156, 7
        %v1158 = vsub.s32 %v1155, %v1157
        %v1159 = vrot.slane %v1152, %v1158
        %v1160 = vlaneseq
        %vm1161 = vcmp.ge.s32.totalorder %v1160, 0
        %vm1162 = vcmp.lt.s32.totalorder %v1160, 256
        %vm1163 = vmand %vm1161, %vm1162
        %1164 = vst.msk [vmem:[%s314] sm:$0x3] %vm1163, %v1159
        %v1165 = vmul.f32 %v375, %v375
        %v1166 = vmul.f32 %v376, %v376
        %v1167 = vmul.f32 %v377, %v377
        %v1168 = vmul.f32 %v378, %v378
        %v1169 = vadd.f32 %v1165, %v1167
        %v1170 = vrot.slane %v1169, 4
        %v1171 = vadd.f32 %v1169, %v1170
        %v1172 = vrot.slane %v1171, 2
        %v1173 = vadd.f32 %v1171, %v1172
        %v1174 = vrot.slane %v1173, 1
        %v1175 = vadd.f32 %v1173, %v1174
        %v1176 = vadd.f32 %v1166, %v1168
        %v1177 = vrot.slane %v1176, 4
        %v1178 = vadd.f32 %v1176, %v1177
        %v1179 = vrot.slane %v1178, 2
        %v1180 = vadd.f32 %v1178, %v1179
        %v1181 = vrot.slane %v1180, 1
        %v1182 = vadd.f32 %v1180, %v1181
        %v1183 = vadd.f32 %v1175, %v787
        %v1184 = vadd.f32 %v1182, %v808
        %v1185 = vmax.f32 %v1183, 0.0
        %v1186 = vmax.f32 %v1184, 0.0
        %v1189 = vcombine.low %v1185, %v1186
        %v1191 = vunpack.c.l.s4 1966171168
        %v1192 = vunpack.c.0.s8 %v1191
        %v1193 = vlaneseq
        %v1194 = vshrl.u32 %v1193, 7
        %v1195 = vsub.s32 %v1192, %v1194
        %v1196 = vrot.slane %v1189, %v1195
        %v1198 = vunpack.c.l.s4 1966171168
        %v1199 = vunpack.c.0.s8 %v1198
        %v1200 = vlaneseq
        %v1201 = vshrl.u32 %v1200, 7
        %v1202 = vsub.s32 %v1199, %v1201
        %v1203 = vrot.slane %v1196, %v1202
        %1205 = vst.msk [vmem:[%s364] sm:$0x3] %vm1163, %v1203
        %v1206 = vadd.f32 %v1032, %v1033
        %1207 = vadd.xlane.f32.xlu0 %v1206
        %v1208 = vpop.xlane.xlu0 %1207
        %v1209 = vadd.f32 %v1034, %v1035
        %1210 = vadd.xlane.f32.xlu0 %v1209
        %v1211 = vpop.xlane.xlu0 %1210
        %v1212 = vadd.f32 %v1036, %v1037
        %1213 = vadd.xlane.f32.xlu0 %v1212
        %v1214 = vpop.xlane.xlu0 %1213
        %v1215 = vadd.f32 %v1038, %v1039
        %1216 = vadd.xlane.f32.xlu0 %v1215
        %v1217 = vpop.xlane.xlu0 %1216
        %v1218 = vadd.f32 %v1040, %v1041
        %1219 = vadd.xlane.f32.xlu0 %v1218
        %v1220 = vpop.xlane.xlu0 %1219
        %v1221 = vadd.f32 %v1042, %v1043
        %1222 = vadd.xlane.f32.xlu0 %v1221
        %v1223 = vpop.xlane.xlu0 %1222
        %v1224 = vadd.f32 %v1044, %v1045
        %1225 = vadd.xlane.f32.xlu0 %v1224
        %v1226 = vpop.xlane.xlu0 %1225
        %v1227 = vadd.f32 %v1046, %v1047
        %1228 = vadd.xlane.f32.xlu0 %v1227
        %v1229 = vpop.xlane.xlu0 %1228
        %v1230 = vadd.f32 %v1048, %v1049
        %1231 = vadd.xlane.f32.xlu0 %v1230
        %v1232 = vpop.xlane.xlu0 %1231
        %v1233 = vadd.f32 %v1050, %v1051
        %1234 = vadd.xlane.f32.xlu0 %v1233
        %v1235 = vpop.xlane.xlu0 %1234
        %v1236 = vadd.f32 %v1052, %v1053
        %1237 = vadd.xlane.f32.xlu0 %v1236
        %v1238 = vpop.xlane.xlu0 %1237
        %v1239 = vadd.f32 %v1054, %v1055
        %1240 = vadd.xlane.f32.xlu0 %v1239
        %v1241 = vpop.xlane.xlu0 %1240
        %v1242 = vadd.f32 %v1056, %v1057
        %1243 = vadd.xlane.f32.xlu0 %v1242
        %v1244 = vpop.xlane.xlu0 %1243
        %v1245 = vadd.f32 %v1058, %v1059
        %1246 = vadd.xlane.f32.xlu0 %v1245
        %v1247 = vpop.xlane.xlu0 %1246
        %v1248 = vadd.f32 %v1060, %v1061
        %1249 = vadd.xlane.f32.xlu0 %v1248
        %v1250 = vpop.xlane.xlu0 %1249
        %v1251 = vadd.f32 %v1062, %v1063
        %1252 = vadd.xlane.f32.xlu0 %v1251
        %v1253 = vpop.xlane.xlu0 %1252
        %vm1254 = vcmask 7168
        %1255 = vst.msk [vmem:[%s374] sm:$0xff] %vm1254, %v1208
        %1256 = vst.msk [vmem:[%s374 + $0x8] sm:$0xff] %vm1254, %v1211
        %1257 = vst.msk [vmem:[%s374 + $0x10] sm:$0xff] %vm1254, %v1214
        %1258 = vst.msk [vmem:[%s374 + $0x18] sm:$0xff] %vm1254, %v1217
        %1259 = vst.msk [vmem:[%s374 + $0x20] sm:$0xff] %vm1254, %v1220
        %1260 = vst.msk [vmem:[%s374 + $0x28] sm:$0xff] %vm1254, %v1223
        %1261 = vst.msk [vmem:[%s374 + $0x30] sm:$0xff] %vm1254, %v1226
        %1262 = vst.msk [vmem:[%s374 + $0x38] sm:$0xff] %vm1254, %v1229
        %1263 = vst.msk [vmem:[%s374 + $0x40] sm:$0xff] %vm1254, %v1232
        %1264 = vst.msk [vmem:[%s374 + $0x48] sm:$0xff] %vm1254, %v1235
        %1265 = vst.msk [vmem:[%s374 + $0x50] sm:$0xff] %vm1254, %v1238
        %1266 = vst.msk [vmem:[%s374 + $0x58] sm:$0xff] %vm1254, %v1241
        %1267 = vst.msk [vmem:[%s374 + $0x60] sm:$0xff] %vm1254, %v1244
        %1268 = vst.msk [vmem:[%s374 + $0x68] sm:$0xff] %vm1254, %v1247
        %1269 = vst.msk [vmem:[%s374 + $0x70] sm:$0xff] %vm1254, %v1250
        %1270 = vst.msk [vmem:[%s374 + $0x78] sm:$0xff] %vm1254, %v1253
        %s1271 = smul.u32 2, %s27
        %p1272 = scmp.lt.s32.totalorder %s26, 1
        %s1273 = scalar_select %p1272, %s26, 1
        %p1274 = scmp.lt.s32.totalorder %s1271, 1
        %s1275 = scalar_select %p1274, %s1271, 1
        %s1276 = smul.addr %s1273, 4
        %s1277 = sadd.s32 %s1275, %s1276
        %s1278 = smul.addr %s1277, 8
        %s1279 = scalar_lea.vmem %s4, %s1278
        %s1280 = sand.u32 %s163, 1
        %s1281 = scalar_lea.sflag [#allocation3], %s1280
        %s1282 = sand.u32 %s163, 1
        %s1283 = smul.addr %s1282, 2
        %s1284 = scalar_lea.vmem [#allocation2], %s1283
        %s1285 = smul.u32 2, %s27
        %p1286 = scmp.lt.s32.totalorder %s26, 1
        %s1287 = scalar_select %p1286, %s26, 1
        %p1288 = scmp.lt.s32.totalorder %s1285, 1
        %s1289 = scalar_select %p1288, %s1285, 1
        %s1290 = smul.addr %s1287, 2
        %s1291 = sadd.s32 %s1289, %s1290
        %s1292 = scalar_lea.vmem %s6, %s1291
        %p1293 = scmp.lt.s32.totalorder %s26, 1
        %s1294 = scalar_select %p1293, %s26, 1
        %p1295 = scmp.lt.s32.totalorder %s27, 0
        %s1296 = scalar_select %p1295, %s27, 0
        %s1297 = smul.addr %s1296, 16
        %s1298 = smul.addr %s1294, 16
        %s1299 = sadd.s32 %s1297, %s1298
        %s1300 = smul.addr %s1299, 8
        %s1301 = scalar_lea.vmem %s7, %s1300
        // Predicated region
        $region37: #{vector_quantizer_ema_forward.1} parent=35 // pred_check
          %p1302 = pneg %p145
        $region38: #{vector_quantizer_ema_forward.1} parent=35 // pred_check_branch
          %1304 = sbr.rel (%p1302) target = $region40
        $region39: #{vector_quantizer_ema_forward.1} parent=35 // pred_region
          %s1305 = smul.u32 2, %s27
        $region40: #{vector_quantizer_ema_forward.1} parent=35 // pred_fallthru
          _
        // Predicated region
        $region41: #{vector_quantizer_ema_forward.1} parent=35 // pred_check
          %p1306 = pneg %p173
        $region42: #{vector_quantizer_ema_forward.1} parent=35 // pred_check_branch
          %1308 = sbr.rel (%p1306) target = $region44
        $region43: #{vector_quantizer_ema_forward.1} parent=35 // pred_region
          %s1309 = smul.u32 2, %s27
          %s1311 = ssub.s32 32, 32
          %1312 = vsyncadd %s1281, %s1311
          %s1313 = smul.addr %s26, 2
          %s1314 = sadd.s32 %s1309, %s1313
          %s1315 = smul.addr %s1314, 16
          %s1316 = scalar_lea.hbm %s5, %s1315
          %s1318 = sshll.u32 %s1284, 4
          %s1319 = int_to_ptr.vmem [resolvable:$true] %s1318
          %1321 = dma.vmem_to_hbm [thread:$0]  %s1319, 32, %s1316, %s1281
        $region44: #{vector_quantizer_ema_forward.1} parent=35 // pred_fallthru
          _
        // Predicated region
        $region45: #{vector_quantizer_ema_forward.1} parent=35 // pred_check
          %p1322 = pneg %p201
        $region46: #{vector_quantizer_ema_forward.1} parent=35 // pred_check_branch
          %1324 = sbr.rel (%p1322) target = $region48
        $region47: #{vector_quantizer_ema_forward.1} parent=35 // pred_region
          %s1325 = smul.u32 2, %s27
        $region48: #{vector_quantizer_ema_forward.1} parent=35 // pred_fallthru
          _
        // Predicated region
        $region49: #{vector_quantizer_ema_forward.1} parent=35 // pred_check
          %p1326 = pneg %p229
        $region50: #{vector_quantizer_ema_forward.1} parent=35 // pred_check_branch
          %1328 = sbr.rel (%p1326) target = $region52
        $region51: #{vector_quantizer_ema_forward.1} parent=35 // pred_region
          _
        $region52: #{vector_quantizer_ema_forward.1} parent=35 // pred_fallthru
          _
      $region36: #{vector_quantizer_ema_forward.1} parent=5 // pred_fallthru
        _
      %p1329 = scmp.le.s32.totalorder 2, %s17
      // Predicated region
      $region53: #{vector_quantizer_ema_forward.1} parent=5 // pred_check
        %p1330 = pneg %p1329
      $region54: #{vector_quantizer_ema_forward.1} parent=5 // pred_check_branch
        %1332 = sbr.rel (%p1330) target = $region56
      $region55: #{vector_quantizer_ema_forward.1} parent=5 // pred_region
        %s1333 = ssub.s32 %s17, 2
        // Predicated region
        $region57: #{vector_quantizer_ema_forward.1} parent=55 // pred_check
          %p1334 = pneg %p151
        $region58: #{vector_quantizer_ema_forward.1} parent=55 // pred_check_branch
          %1336 = sbr.rel (%p1334) target = $region60
        $region59: #{vector_quantizer_ema_forward.1} parent=55 // pred_region
          %s1337 = smul.u32 2, %s29
          %p1338 = scmp.lt.s32.totalorder %s28, 1
          %s1339 = scalar_select %p1338, %s28, 1
          %p1340 = scmp.lt.s32.totalorder %s1337, 1
          %s1341 = scalar_select %p1340, %s1337, 1
          %s1342 = smul.addr %s1339, 4
          %s1343 = sadd.s32 %s1341, %s1342
          %s1344 = smul.addr %s1343, 8
          %s1345 = scalar_lea.vmem %s4, %s1344
        $region60: #{vector_quantizer_ema_forward.1} parent=55 // pred_fallthru
          _
        // Predicated region
        $region61: #{vector_quantizer_ema_forward.1} parent=55 // pred_check
          %p1346 = pneg %p179
        $region62: #{vector_quantizer_ema_forward.1} parent=55 // pred_check_branch
          %1348 = sbr.rel (%p1346) target = $region64
        $region63: #{vector_quantizer_ema_forward.1} parent=55 // pred_region
          %s1349 = sand.u32 %s164, 1
          %s1350 = scalar_lea.sflag [#allocation3], %s1349
          %s1351 = sand.u32 %s164, 1
          %s1352 = smul.addr %s1351, 2
          %s1353 = scalar_lea.vmem [#allocation2], %s1352
          %1354 = dma.done %s1350, 32
        $region64: #{vector_quantizer_ema_forward.1} parent=55 // pred_fallthru
          _
        // Predicated region
        $region65: #{vector_quantizer_ema_forward.1} parent=55 // pred_check
          %p1355 = pneg %p207
        $region66: #{vector_quantizer_ema_forward.1} parent=55 // pred_check_branch
          %1357 = sbr.rel (%p1355) target = $region68
        $region67: #{vector_quantizer_ema_forward.1} parent=55 // pred_region
          %s1358 = smul.u32 2, %s29
          %p1359 = scmp.lt.s32.totalorder %s28, 1
          %s1360 = scalar_select %p1359, %s28, 1
          %p1361 = scmp.lt.s32.totalorder %s1358, 1
          %s1362 = scalar_select %p1361, %s1358, 1
          %s1363 = smul.addr %s1360, 2
          %s1364 = sadd.s32 %s1362, %s1363
          %s1365 = scalar_lea.vmem %s6, %s1364
        $region68: #{vector_quantizer_ema_forward.1} parent=55 // pred_fallthru
          _
        // Predicated region
        $region69: #{vector_quantizer_ema_forward.1} parent=55 // pred_check
          %p1366 = pneg %p235
        $region70: #{vector_quantizer_ema_forward.1} parent=55 // pred_check_branch
          %1368 = sbr.rel (%p1366) target = $region72
        $region71: #{vector_quantizer_ema_forward.1} parent=55 // pred_region
          %p1369 = scmp.lt.s32.totalorder %s28, 1
          %s1370 = scalar_select %p1369, %s28, 1
          %p1371 = scmp.lt.s32.totalorder %s29, 0
          %s1372 = scalar_select %p1371, %s29, 0
          %s1373 = smul.addr %s1372, 16
          %s1374 = smul.addr %s1370, 16
          %s1375 = sadd.s32 %s1373, %s1374
          %s1376 = smul.addr %s1375, 8
          %s1377 = scalar_lea.vmem %s7, %s1376
        $region72: #{vector_quantizer_ema_forward.1} parent=55 // pred_fallthru
          _
      $region56: #{vector_quantizer_ema_forward.1} parent=5 // pred_fallthru
        _
    $region6: #{vector_quantizer_ema_forward.1} parent=1 // loop_footer
      %s21 = sadd.s32 1, %s17
    $region7: #{vector_quantizer_ema_forward.1} parent=1 // loop_footer_branch
      %16 = sbr.rel target = $region3
    $region8: #{vector_quantizer_ema_forward.1} parent=1 // loop_exit
      _
    %1378 = vsyncpa [#allocation3], 1
    %s1379 = scalar_lea.sflag [#allocation3], 1
    %1380 = vsyncpa %s1379, 1

</llo_original>
